<compile_context>
chip_gen: v5e
topology: v5e:2x2
jax: 0.10.0
libtpu: 0.0.40
codegen_flags: <defaults>
</compile_context>

<pallas_src>
import functools

import jax
import jax.numpy as jnp
from jax.experimental import pallas as pl
from jax.experimental.pallas import tpu as pltpu


def _round_up(v, m):
    return ((v + m - 1) // m) * m


def _vpu_prefers_bf16():
    """bf16 VPU lanes exist on v6e/v7x; v5e and older keep the f32 elementwise path."""
    try:
        kind = jax.devices()[0].device_kind.lower()
    except Exception:
        return False
    return any(tag in kind for tag in ("v6", "v7", "7x"))


def _minet_lnl_kernel(x_ref, w1_ref, b1_ref, w2_ref, b2_ref, w3_ref, b3_ref,
                      wh_ref, bh_ref, out_ref, *, rows_last, block_rows, bf16_hidden):
    i = pl.program_id(0)
    last = pl.num_programs(0) - 1

    @pl.when(i == 0)
    def _init():
        out_ref[...] = jnp.full(out_ref.shape, -jnp.inf, out_ref.dtype)

    # mi_NET FC stack (Linear + ReLU). MXU operands are bf16; on v6e/v7x the bias-add/ReLU
    # chain also runs in bf16 (bf16 VPU lanes), on v5e it stays f32.
    x = x_ref[...].astype(jnp.bfloat16)                                   # (TN, 384)
    if bf16_hidden:
        h1 = jnp.maximum(jnp.dot(x, w1_ref[...],
                                 preferred_element_type=jnp.bfloat16) + b1_ref[...], 0)
        h2 = jnp.maximum(jnp.dot(h1, w2_ref[...],
                                 preferred_element_type=jnp.bfloat16) + b2_ref[...], 0)
        h3 = jnp.maximum(jnp.dot(h2, w3_ref[...],
                                 preferred_element_type=jnp.bfloat16) + b3_ref[...], 0)
    else:
        h1 = jnp.maximum(jnp.dot(x, w1_ref[...],
                                 preferred_element_type=jnp.float32) + b1_ref[...],
                         0.0).astype(jnp.bfloat16)
        h2 = jnp.maximum(jnp.dot(h1, w2_ref[...],
                                 preferred_element_type=jnp.float32) + b2_ref[...],
                         0.0).astype(jnp.bfloat16)
        h3 = jnp.maximum(jnp.dot(h2, w3_ref[...],
                                 preferred_element_type=jnp.float32) + b3_ref[...],
                         0.0).astype(jnp.bfloat16)

    # Fused, lane-padded score heads: lanes [0, n_classes) = main head, next n_groups lanes
    # = aux head, remaining lanes have zero weight/bias (sliced off in the wrapper).
    # Head logits kept in f32 for the -inf mask / running max.
    logits = jnp.dot(h3, wh_ref[...],
                     preferred_element_type=jnp.float32) + bh_ref[...]    # (TN, 128)

    if rows_last == block_rows:
        # Every tile is full: no row mask needed anywhere.
        out_ref[...] = jnp.maximum(out_ref[...], jnp.max(logits, axis=0, keepdims=True))
    else:
        @pl.when(i < last)
        def _full_tile():
            out_ref[...] = jnp.maximum(out_ref[...],
                                       jnp.max(logits, axis=0, keepdims=True))

        @pl.when(i == last)
        def _ragged_tile():
            # Last tile overhangs the array: the extra rows hold garbage; mask them so
            # they can never win the max pool.
            row = jax.lax.broadcasted_iota(jnp.int32, (block_rows, 1), 0)
            masked = jnp.where(row < rows_last, logits, -jnp.inf)
            out_ref[...] = jnp.maximum(out_ref[...],
                                       jnp.max(masked, axis=0, keepdims=True))

    # Sigmoid applied once at the very end (monotonic => max(sigmoid(z)) == sigmoid(max(z))).
    @pl.when(i == last)
    def _finalize():
        out_ref[...] = jax.nn.sigmoid(out_ref[...])


def init_params(key, size=(384, 256, 128, 64), n_classes=1, n_groups=1):
    """Deterministic PyTorch-Linear-style init: U(-1/sqrt(fan_in), 1/sqrt(fan_in))."""
    dims = [(size[0], size[1]), (size[1], size[2]), (size[2], size[3]),
            (size[3], n_classes), (size[3], n_groups)]
    names = ["1", "2", "3", "m", "a"]
    params = {}
    for (fan_in, fan_out), name in zip(dims, names):
        key, kw, kb = jax.random.split(key, 3)
        bound = 1.0 / jnp.sqrt(jnp.float32(fan_in))
        params["w" + name] = jax.random.uniform(
            kw, (fan_in, fan_out), jnp.float32, -bound, bound)
        params["b" + name] = jax.random.uniform(
            kb, (1, fan_out), jnp.float32, -bound, bound)
    return params


def prepare_params(params, bf16_hidden=False, n_lanes=128):
    """One-time kernel-operand prep: fused lane-padded head + bf16 weight casts."""
    n_classes = params["wm"].shape[1]
    n_groups = params["wa"].shape[1]
    n_heads = n_classes + n_groups
    feat_dim = params["w3"].shape[1]
    assert n_heads <= n_lanes, "fused head assumes n_classes + n_groups <= 128 lanes"

    wh = jnp.zeros((feat_dim, n_lanes), jnp.float32)
    wh = wh.at[:, :n_classes].set(params["wm"])
    wh = wh.at[:, n_classes:n_heads].set(params["wa"])
    bh = jnp.zeros((1, n_lanes), jnp.float32)
    bh = bh.at[:, :n_classes].set(params["bm"])
    bh = bh.at[:, n_classes:n_heads].set(params["ba"])

    bias_dtype = jnp.bfloat16 if bf16_hidden else jnp.float32
    return {
        "w1": params["w1"].astype(jnp.bfloat16), "b1": params["b1"].astype(bias_dtype),
        "w2": params["w2"].astype(jnp.bfloat16), "b2": params["b2"].astype(bias_dtype),
        "w3": params["w3"].astype(jnp.bfloat16), "b3": params["b3"].astype(bias_dtype),
        "wh": wh.astype(jnp.bfloat16), "bh": bh,        # head bias stays f32
        "n_classes": n_classes, "n_groups": n_groups, "bf16_hidden": bf16_hidden,
    }


def mi_net_lnl_forward(x, prepped, is_adv=True, block_rows=1024):
    # is_adv only toggles grad_reverse, which is identity in the forward pass.
    del is_adv
    n, d_in = x.shape
    n_classes = prepped["n_classes"]
    n_groups = prepped["n_groups"]

    # Instance tile: multiple of 16 rows (bf16 sublane packing), clamped to the bag size.
    tn = _round_up(max(1, min(block_rows, n)), 16)
    grid_size = pl.cdiv(n, tn)
    rows_last = n - (grid_size - 1) * tn          # rows of valid data in the last tile

    kernel = functools.partial(_minet_lnl_kernel, rows_last=rows_last,
                               block_rows=tn, bf16_hidden=prepped["bf16_hidden"])

    def const(arr):   # weights/biases: same block every step -> stay resident in VMEM
        return pl.BlockSpec(arr.shape, lambda i: (0, 0))

    h1d = prepped["w1"].shape[1]
    h2d = prepped["w2"].shape[1]
    h3d = prepped["w3"].shape[1]
    weight_bytes = sum(int(prepped[k].size) * prepped[k].dtype.itemsize
                       for k in ("w1", "b1", "w2", "b2", "w3", "b3", "wh", "bh"))
    cost = pl.CostEstimate(
        flops=int(2 * n * (d_in * h1d + h1d * h2d + h2d * h3d + h3d * 128)),
        transcendentals=128,
        bytes_accessed=int(x.size) * x.dtype.itemsize + weight_bytes + 128 * 4,
    )

    out = pl.pallas_call(
        kernel,
        out_shape=jax.ShapeDtypeStruct((1, 128), jnp.float32),
        grid_spec=pltpu.PrefetchScalarGridSpec(
            num_scalar_prefetch=0,
            grid=(grid_size,),
            in_specs=[
                pl.BlockSpec((tn, d_in), lambda i: (i, 0)),   # x tiled over instances (f32)
                const(prepped["w1"]), const(prepped["b1"]),
                const(prepped["w2"]), const(prepped["b2"]),
                const(prepped["w3"]), const(prepped["b3"]),
                const(prepped["wh"]), const(prepped["bh"]),
            ],
            out_specs=pl.BlockSpec((1, 128), lambda i: (0, 0)),
        ),
        compiler_params=pltpu.CompilerParams(
            dimension_semantics=("arbitrary",)),   # instance axis is a reduction (max pool)
        cost_estimate=cost,
    )(x, prepped["w1"], prepped["b1"], prepped["w2"], prepped["b2"],
      prepped["w3"], prepped["b3"], prepped["wh"], prepped["bh"])

    preds = out[0, :n_classes]
    preds_aux = out[0, n_classes:n_classes + n_groups]
    # Module returns (preds, preds_aux, None, None); features are only used internally.
    return preds, preds_aux, None, None


def _ref_forward(x, params):
    """Pure-JAX f32 reference of the PyTorch forward."""
    h = x
    for name in ("1", "2", "3"):
        h = jnp.maximum(h @ params["w" + name] + params["b" + name], 0.0)
    preds = jnp.max(jax.nn.sigmoid(h @ params["wm"] + params["bm"]), axis=0)
    preds_aux = jnp.max(jax.nn.sigmoid(h @ params["wa"] + params["ba"]), axis=0)
    return preds, preds_aux


if __name__ == "__main__":
    key = jax.random.PRNGKey(0)
    k_params, k_x_small, k_x_big = jax.random.split(key, 3)

    size = (384, 256, 128, 64)
    n_classes, n_groups = 1, 1
    params = init_params(k_params, size=size, n_classes=n_classes, n_groups=n_groups)

    bf16_hidden = _vpu_prefers_bf16()
    prepped = prepare_params(params, bf16_hidden=bf16_hidden)

    # Small bag (single, exactly-full tile) and a larger bag (multiple tiles + ragged tail).
    cases = ((k_x_small, 16, 1024), (k_x_big, 1000, 256))
    for k_x, n_instances, block_rows in cases:
        x = jax.random.normal(k_x, (n_instances, size[0]), jnp.float32)
        preds, preds_aux, _, _ = mi_net_lnl_forward(x, prepped, is_adv=True,
                                                    block_rows=block_rows)
        jax.block_until_ready((preds, preds_aux))

        assert preds.shape == (n_classes,)
        assert preds_aux.shape == (n_groups,)
        assert bool(jnp.all((preds >= 0.0) & (preds <= 1.0)))
        assert bool(jnp.all((preds_aux >= 0.0) & (preds_aux <= 1.0)))

        ref_p, ref_a = _ref_forward(x, params)
        assert bool(jnp.allclose(preds, ref_p, atol=5e-2)), (preds, ref_p)
        assert bool(jnp.allclose(preds_aux, ref_a, atol=5e-2)), (preds_aux, ref_a)

    print("KERNEL_OK")
</pallas_src>

<mosaic_0001>
module attributes {stable_mosaic.version = 11 : i64} {
  func.func @_minet_lnl_kernel(%arg0: i32, %arg1: memref<16x384xf32, #tpu.memory_space<vmem>>, %arg2: memref<384x256xbf16, #tpu.memory_space<vmem>>, %arg3: memref<1x256xf32, #tpu.memory_space<vmem>>, %arg4: memref<256x128xbf16, #tpu.memory_space<vmem>>, %arg5: memref<1x128xf32, #tpu.memory_space<vmem>>, %arg6: memref<128x64xbf16, #tpu.memory_space<vmem>>, %arg7: memref<1x64xf32, #tpu.memory_space<vmem>>, %arg8: memref<64x128xbf16, #tpu.memory_space<vmem>>, %arg9: memref<1x128xf32, #tpu.memory_space<vmem>>, %arg10: memref<1x128xf32, #tpu.memory_space<vmem>>) attributes {dimension_semantics = [#tpu.dimension_semantics<arbitrary>], iteration_bounds = array<i64: 1>, scalar_prefetch = 0 : i64, scratch_operands = 0 : i64, tpu.core_type = #tpu.core_type<tc>, window_params = [{transform_indices = @transform_0, window_bounds = array<i64: 16, 384>}, {pipeline_mode = #tpu.pipeline_mode<synchronous>, transform_indices = @transform_1, window_bounds = array<i64: 384, 256>}, {pipeline_mode = #tpu.pipeline_mode<synchronous>, transform_indices = @transform_2, window_bounds = array<i64: 1, 256>}, {pipeline_mode = #tpu.pipeline_mode<synchronous>, transform_indices = @transform_3, window_bounds = array<i64: 256, 128>}, {pipeline_mode = #tpu.pipeline_mode<synchronous>, transform_indices = @transform_4, window_bounds = array<i64: 1, 128>}, {pipeline_mode = #tpu.pipeline_mode<synchronous>, transform_indices = @transform_5, window_bounds = array<i64: 128, 64>}, {pipeline_mode = #tpu.pipeline_mode<synchronous>, transform_indices = @transform_6, window_bounds = array<i64: 1, 64>}, {pipeline_mode = #tpu.pipeline_mode<synchronous>, transform_indices = @transform_7, window_bounds = array<i64: 64, 128>}, {pipeline_mode = #tpu.pipeline_mode<synchronous>, transform_indices = @transform_8, window_bounds = array<i64: 1, 128>}, {pipeline_mode = #tpu.pipeline_mode<synchronous>, transform_indices = @transform_9, window_bounds = array<i64: 1, 128>}]} {
    %c0_i32 = arith.constant 0 : i32
    %0 = arith.cmpi eq, %arg0, %c0_i32 : i32
    %1 = arith.extui %0 : i1 to i32
    %c0_i32_0 = arith.constant 0 : i32
    %2 = arith.cmpi ne, %1, %c0_i32_0 : i32
    scf.if %2 {
      %cst_31 = arith.constant 0xFF800000 : f32
      %42 = vector.broadcast %cst_31 : f32 to vector<1x128xf32>
      %c0_32 = arith.constant 0 : index
      %c0_33 = arith.constant 0 : index
      %43 = vector.load %arg10[%c0_32, %c0_33] : memref<1x128xf32, #tpu.memory_space<vmem>>, vector<1x128xf32>
      tpu.vector_store %arg10[%c0_32, %c0_33], %42 {strides = array<i32>} : memref<1x128xf32, #tpu.memory_space<vmem>>, vector<1x128xf32>,
    } else {
    }
    %c0 = arith.constant 0 : index
    %c0_1 = arith.constant 0 : index
    %3 = vector.load %arg1[%c0, %c0_1] : memref<16x384xf32, #tpu.memory_space<vmem>>, vector<16x384xf32>
    %4 = arith.truncf %3 : vector<16x384xf32> to vector<16x384xbf16>
    %c0_2 = arith.constant 0 : index
    %c0_3 = arith.constant 0 : index
    %5 = vector.load %arg2[%c0_2, %c0_3] : memref<384x256xbf16, #tpu.memory_space<vmem>>, vector<384x256xbf16>
    %cst = arith.constant dense<0.000000e+00> : vector<16x256xf32>
    %6 = tpu.matmul %4, %5, %cst {dimension_numbers = #tpu.dot_dimension_numbers<[1], [0], [0], [1], [0, 0, 1, 1], [], []>} : vector<16x384xbf16>, vector<384x256xbf16>, vector<16x256xf32> -> vector<16x256xf32>
    %c0_4 = arith.constant 0 : index
    %c0_5 = arith.constant 0 : index
    %7 = vector.load %arg3[%c0_4, %c0_5] : memref<1x256xf32, #tpu.memory_space<vmem>>, vector<1x256xf32>
    %8 = vector.broadcast %7 : vector<1x256xf32> to vector<16x256xf32>
    %9 = arith.addf %6, %8 : vector<16x256xf32>
    %cst_6 = arith.constant 0.000000e+00 : f32
    %10 = vector.broadcast %cst_6 : f32 to vector<16x256xf32>
    %11 = arith.maximumf %9, %10 : vector<16x256xf32>
    %12 = arith.truncf %11 : vector<16x256xf32> to vector<16x256xbf16>
    %c0_7 = arith.constant 0 : index
    %c0_8 = arith.constant 0 : index
    %13 = vector.load %arg4[%c0_7, %c0_8] : memref<256x128xbf16, #tpu.memory_space<vmem>>, vector<256x128xbf16>
    %cst_9 = arith.constant dense<0.000000e+00> : vector<16x128xf32>
    %14 = tpu.matmul %12, %13, %cst_9 {dimension_numbers = #tpu.dot_dimension_numbers<[1], [0], [0], [1], [0, 0, 1, 1], [], []>} : vector<16x256xbf16>, vector<256x128xbf16>, vector<16x128xf32> -> vector<16x128xf32>
    %c0_10 = arith.constant 0 : index
    %c0_11 = arith.constant 0 : index
    %15 = vector.load %arg5[%c0_10, %c0_11] : memref<1x128xf32, #tpu.memory_space<vmem>>, vector<1x128xf32>
    %16 = vector.broadcast %15 : vector<1x128xf32> to vector<16x128xf32>
    %17 = arith.addf %14, %16 : vector<16x128xf32>
    %cst_12 = arith.constant 0.000000e+00 : f32
    %18 = vector.broadcast %cst_12 : f32 to vector<16x128xf32>
    %19 = arith.maximumf %17, %18 : vector<16x128xf32>
    %20 = arith.truncf %19 : vector<16x128xf32> to vector<16x128xbf16>
    %c0_13 = arith.constant 0 : index
    %c0_14 = arith.constant 0 : index
    %21 = vector.load %arg6[%c0_13, %c0_14] : memref<128x64xbf16, #tpu.memory_space<vmem>>, vector<128x64xbf16>
    %cst_15 = arith.constant dense<0.000000e+00> : vector<16x64xf32>
    %22 = tpu.matmul %20, %21, %cst_15 {dimension_numbers = #tpu.dot_dimension_numbers<[1], [0], [0], [1], [0, 0, 1, 1], [], []>} : vector<16x128xbf16>, vector<128x64xbf16>, vector<16x64xf32> -> vector<16x64xf32>
    %c0_16 = arith.constant 0 : index
    %c0_17 = arith.constant 0 : index
    %23 = vector.load %arg7[%c0_16, %c0_17] : memref<1x64xf32, #tpu.memory_space<vmem>>, vector<1x64xf32>
    %24 = vector.broadcast %23 : vector<1x64xf32> to vector<16x64xf32>
    %25 = arith.addf %22, %24 : vector<16x64xf32>
    %cst_18 = arith.constant 0.000000e+00 : f32
    %26 = vector.broadcast %cst_18 : f32 to vector<16x64xf32>
    %27 = arith.maximumf %25, %26 : vector<16x64xf32>
    %28 = arith.truncf %27 : vector<16x64xf32> to vector<16x64xbf16>
    %c0_19 = arith.constant 0 : index
    %c0_20 = arith.constant 0 : index
    %29 = vector.load %arg8[%c0_19, %c0_20] : memref<64x128xbf16, #tpu.memory_space<vmem>>, vector<64x128xbf16>
    %cst_21 = arith.constant dense<0.000000e+00> : vector<16x128xf32>
    %30 = tpu.matmul %28, %29, %cst_21 {dimension_numbers = #tpu.dot_dimension_numbers<[1], [0], [0], [1], [0, 0, 1, 1], [], []>} : vector<16x64xbf16>, vector<64x128xbf16>, vector<16x128xf32> -> vector<16x128xf32>
    %c0_22 = arith.constant 0 : index
    %c0_23 = arith.constant 0 : index
    %31 = vector.load %arg9[%c0_22, %c0_23] : memref<1x128xf32, #tpu.memory_space<vmem>>, vector<1x128xf32>
    %32 = vector.broadcast %31 : vector<1x128xf32> to vector<16x128xf32>
    %33 = arith.addf %30, %32 : vector<16x128xf32>
    %c0_24 = arith.constant 0 : index
    %c0_25 = arith.constant 0 : index
    %34 = vector.load %arg10[%c0_24, %c0_25] : memref<1x128xf32, #tpu.memory_space<vmem>>, vector<1x128xf32>
    %cst_26 = arith.constant dense<0xFF800000> : vector<128xf32>
    %35 = vector.multi_reduction <maximumf>, %33, %cst_26 [0] : vector<16x128xf32> to vector<128xf32>
    %36 = vector.shape_cast %35 : vector<128xf32> to vector<1x128xf32>
    %37 = arith.maximumf %34, %36 : vector<1x128xf32>
    %c0_27 = arith.constant 0 : index
    %c0_28 = arith.constant 0 : index
    %38 = vector.load %arg10[%c0_27, %c0_28] : memref<1x128xf32, #tpu.memory_space<vmem>>, vector<1x128xf32>
    tpu.vector_store %arg10[%c0_27, %c0_28], %37 {strides = array<i32>} : memref<1x128xf32, #tpu.memory_space<vmem>>, vector<1x128xf32>,
    %c0_i32_29 = arith.constant 0 : i32
    %39 = arith.cmpi eq, %arg0, %c0_i32_29 : i32
    %40 = arith.extui %39 : i1 to i32
    %c0_i32_30 = arith.constant 0 : i32
    %41 = arith.cmpi ne, %40, %c0_i32_30 : i32
    scf.if %41 {
      %c0_31 = arith.constant 0 : index
      %c0_32 = arith.constant 0 : index
      %42 = vector.load %arg10[%c0_31, %c0_32] : memref<1x128xf32, #tpu.memory_space<vmem>>, vector<1x128xf32>
      %43 = arith.negf %42 : vector<1x128xf32>
      %44 = math.exp %43 : vector<1x128xf32>
      %cst_33 = arith.constant 1.000000e+00 : f32
      %45 = vector.broadcast %cst_33 : f32 to vector<1x128xf32>
      %46 = arith.addf %45, %44 : vector<1x128xf32>
      %47 = arith.divf %45, %46 : vector<1x128xf32>
      %c0_34 = arith.constant 0 : index
      %c0_35 = arith.constant 0 : index
      %48 = vector.load %arg10[%c0_34, %c0_35] : memref<1x128xf32, #tpu.memory_space<vmem>>, vector<1x128xf32>
      tpu.vector_store %arg10[%c0_34, %c0_35], %47 {strides = array<i32>} : memref<1x128xf32, #tpu.memory_space<vmem>>, vector<1x128xf32>,
    } else {
    }
    return
  }
  func.func @transform_0(%arg0: i32) -> (i32, i32) {
    %c0_i32 = arith.constant 0 : i32
    %c0_i32_0 = arith.constant 0 : i32
    return %arg0, %c0_i32 : i32, i32
  }
  func.func @transform_1(%arg0: i32) -> (i32, i32) {
    %c0_i32 = arith.constant 0 : i32
    %c0_i32_0 = arith.constant 0 : i32
    %c0_i32_1 = arith.constant 0 : i32
    return %c0_i32, %c0_i32_0 : i32, i32
  }
  func.func @transform_2(%arg0: i32) -> (i32, i32) {
    %c0_i32 = arith.constant 0 : i32
    %c0_i32_0 = arith.constant 0 : i32
    %c0_i32_1 = arith.constant 0 : i32
    return %c0_i32, %c0_i32_0 : i32, i32
  }
  func.func @transform_3(%arg0: i32) -> (i32, i32) {
    %c0_i32 = arith.constant 0 : i32
    %c0_i32_0 = arith.constant 0 : i32
    %c0_i32_1 = arith.constant 0 : i32
    return %c0_i32, %c0_i32_0 : i32, i32
  }
  func.func @transform_4(%arg0: i32) -> (i32, i32) {
    %c0_i32 = arith.constant 0 : i32
    %c0_i32_0 = arith.constant 0 : i32
    %c0_i32_1 = arith.constant 0 : i32
    return %c0_i32, %c0_i32_0 : i32, i32
  }
  func.func @transform_5(%arg0: i32) -> (i32, i32) {
    %c0_i32 = arith.constant 0 : i32
    %c0_i32_0 = arith.constant 0 : i32
    %c0_i32_1 = arith.constant 0 : i32
    return %c0_i32, %c0_i32_0 : i32, i32
  }
  func.func @transform_6(%arg0: i32) -> (i32, i32) {
    %c0_i32 = arith.constant 0 : i32
    %c0_i32_0 = arith.constant 0 : i32
    %c0_i32_1 = arith.constant 0 : i32
    return %c0_i32, %c0_i32_0 : i32, i32
  }
  func.func @transform_7(%arg0: i32) -> (i32, i32) {
    %c0_i32 = arith.constant 0 : i32
    %c0_i32_0 = arith.constant 0 : i32
    %c0_i32_1 = arith.constant 0 : i32
    return %c0_i32, %c0_i32_0 : i32, i32
  }
  func.func @transform_8(%arg0: i32) -> (i32, i32) {
    %c0_i32 = arith.constant 0 : i32
    %c0_i32_0 = arith.constant 0 : i32
    %c0_i32_1 = arith.constant 0 : i32
    return %c0_i32, %c0_i32_0 : i32, i32
  }
  func.func @transform_9(%arg0: i32) -> (i32, i32) {
    %c0_i32 = arith.constant 0 : i32
    %c0_i32_0 = arith.constant 0 : i32
    %c0_i32_1 = arith.constant 0 : i32
    return %c0_i32, %c0_i32_0 : i32, i32
  }
}

</mosaic_0001>

<llo_original>
// kernel: tpu_custom_call.1
$region0: #{tpu_custom_call.1}
  #allocation0 [shape = 'u32[]', space=smem, size = 0x4, offset = 0x4, fixed_abs, tag = 'smem constant byte address 0x4 - core index']
  #allocation1 [shape = 'u32[72,128]{1,0:T(1,128)}', space=vmem, size = 0x9000, scoped, tag = 'internal scratch']
  %s0 = inlined_call_operand.vmem [shape: f32[16,384], index: 0, kind: input, shape index: {}]
  %s1 = inlined_call_operand.hbm [shape: bf16[384,256], index: 1, kind: input, shape index: {}]
  %s2 = inlined_call_operand.vmem [shape: f32[1,256], index: 2, kind: input, shape index: {}]
  %s3 = inlined_call_operand.hbm [shape: bf16[256,128], index: 3, kind: input, shape index: {}]
  %s4 = inlined_call_operand.vmem [shape: f32[1,128], index: 4, kind: input, shape index: {}]
  %s5 = inlined_call_operand.vmem [shape: bf16[128,64], index: 5, kind: input, shape index: {}]
  %s6 = inlined_call_operand.vmem [shape: f32[1,64], index: 6, kind: input, shape index: {}]
  %s7 = inlined_call_operand.vmem [shape: bf16[64,128], index: 7, kind: input, shape index: {}]
  %s8 = inlined_call_operand.vmem [shape: f32[1,128], index: 8, kind: input, shape index: {}]
  %s9 = inlined_call_operand.hbm [shape: f32[1,128], index: 9, kind: output, shape index: {}]
  %s10 = sld [smem:[#allocation0]]
  $region62: #{tpu_custom_call.1} parent=0
    _
  %s12 = ssub.s32 1, %s10
  %s13 = scalar_select 0, %s12, %s10
  $region1: #{tpu_custom_call.1} parent=0
    #allocation2 [shape = 'u8[196608]{0}', space=vmem, size = 0x30000, scoped, tag = 'input window, operand 1, single buffered']
    #allocation3 [shape = 's32[1]{0}', space=sflag, size = 0x4, scoped, tag = 'scoped memory for tpu_custom_call.1']
    #allocation4 [shape = 's32[1]{0}', space=sflag, size = 0x4, scoped, tag = 'scoped memory for tpu_custom_call.1']
    #allocation5 [shape = 'u8[65536]{0}', space=vmem, size = 0x10000, scoped, tag = 'input window, operand 3, single buffered']
    #allocation6 [shape = 's32[1]{0}', space=sflag, size = 0x4, scoped, tag = 'scoped memory for tpu_custom_call.1']
    #allocation7 [shape = 'u8[512]{0}', space=vmem, size = 0x400, scoped, tag = 'output window, operand 0, single buffered']
    %14 = vsyncpa [#allocation3], 0
    %15 = vsyncpa [#allocation6], 0
    %16 = vsyncpa [#allocation4], 0
    // Predicated region
    $region2: #{tpu_custom_call.1} parent=1 // pred_check
      _
    $region3: #{tpu_custom_call.1} parent=1 // pred_check_branch
      %18 = sbr.rel (0) target = $region5
    $region4: #{tpu_custom_call.1} parent=1 // pred_region
      _
    $region5: #{tpu_custom_call.1} parent=1 // pred_fallthru
      _
    // Predicated region
    $region6: #{tpu_custom_call.1} parent=1 // pred_check
      _
    $region7: #{tpu_custom_call.1} parent=1 // pred_check_branch
      %20 = sbr.rel (0) target = $region9
    $region8: #{tpu_custom_call.1} parent=1 // pred_region
      %22 = vsyncadd [#allocation3], 0
      %s23 = sshll.u32 %s1, 4
      %s24 = int_to_ptr.hbm [resolvable:$true] %s23
      %s25 = sshll.u32 [#allocation2], 4
      %s26 = int_to_ptr.vmem [resolvable:$true] %s25
      %31 = dma.hbm_to_vmem [thread:$0]  %s24, 6144, %s26, [#allocation3], 128, 128, 8
    $region9: #{tpu_custom_call.1} parent=1 // pred_fallthru
      _
    // Predicated region
    $region10: #{tpu_custom_call.1} parent=1 // pred_check
      _
    $region11: #{tpu_custom_call.1} parent=1 // pred_check_branch
      %33 = sbr.rel (0) target = $region13
    $region12: #{tpu_custom_call.1} parent=1 // pred_region
      _
    $region13: #{tpu_custom_call.1} parent=1 // pred_fallthru
      _
    // Predicated region
    $region14: #{tpu_custom_call.1} parent=1 // pred_check
      _
    $region15: #{tpu_custom_call.1} parent=1 // pred_check_branch
      %35 = sbr.rel (0) target = $region17
    $region16: #{tpu_custom_call.1} parent=1 // pred_region
      %37 = vsyncadd [#allocation6], 0
      %s38 = sshll.u32 %s3, 4
      %s39 = int_to_ptr.hbm [resolvable:$true] %s38
      %s40 = sshll.u32 [#allocation5], 4
      %s41 = int_to_ptr.vmem [resolvable:$true] %s40
      %46 = dma.hbm_to_vmem [thread:$0]  %s39, 2048, %s41, [#allocation6], 64, 64, 4
    $region17: #{tpu_custom_call.1} parent=1 // pred_fallthru
      _
    // Predicated region
    $region18: #{tpu_custom_call.1} parent=1 // pred_check
      _
    $region19: #{tpu_custom_call.1} parent=1 // pred_check_branch
      %48 = sbr.rel (0) target = $region21
    $region20: #{tpu_custom_call.1} parent=1 // pred_region
      _
    $region21: #{tpu_custom_call.1} parent=1 // pred_fallthru
      _
    // Predicated region
    $region22: #{tpu_custom_call.1} parent=1 // pred_check
      _
    $region23: #{tpu_custom_call.1} parent=1 // pred_check_branch
      %50 = sbr.rel (0) target = $region25
    $region24: #{tpu_custom_call.1} parent=1 // pred_region
      _
    $region25: #{tpu_custom_call.1} parent=1 // pred_fallthru
      _
    // Predicated region
    $region26: #{tpu_custom_call.1} parent=1 // pred_check
      _
    $region27: #{tpu_custom_call.1} parent=1 // pred_check_branch
      %52 = sbr.rel (0) target = $region29
    $region28: #{tpu_custom_call.1} parent=1 // pred_region
      _
    $region29: #{tpu_custom_call.1} parent=1 // pred_fallthru
      _
    // Predicated region
    $region30: #{tpu_custom_call.1} parent=1 // pred_check
      _
    $region31: #{tpu_custom_call.1} parent=1 // pred_check_branch
      %54 = sbr.rel (0) target = $region33
    $region32: #{tpu_custom_call.1} parent=1 // pred_region
      _
    $region33: #{tpu_custom_call.1} parent=1 // pred_fallthru
      _
    // Predicated region
    $region34: #{tpu_custom_call.1} parent=1 // pred_check
      _
    $region35: #{tpu_custom_call.1} parent=1 // pred_check_branch
      %56 = sbr.rel (0) target = $region37
    $region36: #{tpu_custom_call.1} parent=1 // pred_region
      _
    $region37: #{tpu_custom_call.1} parent=1 // pred_fallthru
      _
    // Predicated region
    $region38: #{tpu_custom_call.1} parent=1 // pred_check
      _
    $region39: #{tpu_custom_call.1} parent=1 // pred_check_branch
      %58 = sbr.rel (0) target = $region41
    $region40: #{tpu_custom_call.1} parent=1 // pred_region
      %60 = dma.done [#allocation3], 6144
    $region41: #{tpu_custom_call.1} parent=1 // pred_fallthru
      _
    // Predicated region
    $region42: #{tpu_custom_call.1} parent=1 // pred_check
      _
    $region43: #{tpu_custom_call.1} parent=1 // pred_check_branch
      %62 = sbr.rel (0) target = $region45
    $region44: #{tpu_custom_call.1} parent=1 // pred_region
      %64 = dma.done [#allocation6], 2048
    $region45: #{tpu_custom_call.1} parent=1 // pred_fallthru
      _
    %p66 = scmp.eq.s32.totalorder 0, 0
    // Predicated region
    $region46: #{tpu_custom_call.1} parent=1 // pred_check
      %p67 = pneg %p66
    $region47: #{tpu_custom_call.1} parent=1 // pred_check_branch
      %69 = sbr.rel (%p67) target = $region49
    $region48: #{tpu_custom_call.1} parent=1 // pred_region
      %70 = vst [vmem:[#allocation7] sm:$0x1] -inf
    $region49: #{tpu_custom_call.1} parent=1 // pred_fallthru
      _
    %v71 = vld [vmem:[%s0] sm:$0xff]
    %v72 = vld [vmem:[%s0 + $0x8] sm:$0xff]
    %v73 = vld [vmem:[%s0 + $0x10] sm:$0xff]
    %v74 = vld [vmem:[%s0 + $0x18] sm:$0xff]
    %v75 = vld [vmem:[%s0 + $0x20] sm:$0xff]
    %v76 = vld [vmem:[%s0 + $0x28] sm:$0xff]
    %v77 = vpack.c.bf16 %v74, %v71
    %v78 = vpack.c.bf16 %v75, %v72
    %v79 = vpack.c.bf16 %v76, %v73
    %v80 = vld [vmem:[#allocation2] sm:$0xff]
    %v81 = vld [vmem:[#allocation2 + $0x8] sm:$0xff]
    %v82 = vld [vmem:[#allocation2 + $0x10] sm:$0xff]
    %v83 = vld [vmem:[#allocation2 + $0x18] sm:$0xff]
    %v84 = vld [vmem:[#allocation2 + $0x20] sm:$0xff]
    %v85 = vld [vmem:[#allocation2 + $0x28] sm:$0xff]
    %v86 = vld [vmem:[#allocation2 + $0x30] sm:$0xff]
    %v87 = vld [vmem:[#allocation2 + $0x38] sm:$0xff]
    %v88 = vld [vmem:[#allocation2 + $0x40] sm:$0xff]
    %v89 = vld [vmem:[#allocation2 + $0x48] sm:$0xff]
    %v90 = vld [vmem:[#allocation2 + $0x50] sm:$0xff]
    %v91 = vld [vmem:[#allocation2 + $0x58] sm:$0xff]
    %v92 = vld [vmem:[#allocation2 + $0x60] sm:$0xff]
    %v93 = vld [vmem:[#allocation2 + $0x68] sm:$0xff]
    %v94 = vld [vmem:[#allocation2 + $0x70] sm:$0xff]
    %v95 = vld [vmem:[#allocation2 + $0x78] sm:$0xff]
    %v96 = vld [vmem:[#allocation2 + $0x80] sm:$0xff]
    %v97 = vld [vmem:[#allocation2 + $0x88] sm:$0xff]
    %v98 = vld [vmem:[#allocation2 + $0x90] sm:$0xff]
    %v99 = vld [vmem:[#allocation2 + $0x98] sm:$0xff]
    %v100 = vld [vmem:[#allocation2 + $0xa0] sm:$0xff]
    %v101 = vld [vmem:[#allocation2 + $0xa8] sm:$0xff]
    %v102 = vld [vmem:[#allocation2 + $0xb0] sm:$0xff]
    %v103 = vld [vmem:[#allocation2 + $0xb8] sm:$0xff]
    %v104 = vld [vmem:[#allocation2 + $0xc0] sm:$0xff]
    %v105 = vld [vmem:[#allocation2 + $0xc8] sm:$0xff]
    %v106 = vld [vmem:[#allocation2 + $0xd0] sm:$0xff]
    %v107 = vld [vmem:[#allocation2 + $0xd8] sm:$0xff]
    %v108 = vld [vmem:[#allocation2 + $0xe0] sm:$0xff]
    %v109 = vld [vmem:[#allocation2 + $0xe8] sm:$0xff]
    %v110 = vld [vmem:[#allocation2 + $0xf0] sm:$0xff]
    %v111 = vld [vmem:[#allocation2 + $0xf8] sm:$0xff]
    %v112 = vld [vmem:[#allocation2 + $0x100] sm:$0xff]
    %v113 = vld [vmem:[#allocation2 + $0x108] sm:$0xff]
    %v114 = vld [vmem:[#allocation2 + $0x110] sm:$0xff]
    %v115 = vld [vmem:[#allocation2 + $0x118] sm:$0xff]
    %v116 = vld [vmem:[#allocation2 + $0x120] sm:$0xff]
    %v117 = vld [vmem:[#allocation2 + $0x128] sm:$0xff]
    %v118 = vld [vmem:[#allocation2 + $0x130] sm:$0xff]
    %v119 = vld [vmem:[#allocation2 + $0x138] sm:$0xff]
    %v120 = vld [vmem:[#allocation2 + $0x140] sm:$0xff]
    %v121 = vld [vmem:[#allocation2 + $0x148] sm:$0xff]
    %v122 = vld [vmem:[#allocation2 + $0x150] sm:$0xff]
    %v123 = vld [vmem:[#allocation2 + $0x158] sm:$0xff]
    %v124 = vld [vmem:[#allocation2 + $0x160] sm:$0xff]
    %v125 = vld [vmem:[#allocation2 + $0x168] sm:$0xff]
    %v126 = vld [vmem:[#allocation2 + $0x170] sm:$0xff]
    %v127 = vld [vmem:[#allocation2 + $0x178] sm:$0xff]
    %v128 = vld [vmem:[%s2] sm:$0x3]
    %v130 = vperm.slane %v128, 0
    %v131 = vperm.slane %v128, 1
    %v182 = vunpack.c.l.b16 %v80
    %v183 = vunpack.c.h.b16 %v80
    %v184 = vunpack.c.l.b16 %v81
    %v185 = vunpack.c.h.b16 %v81
    %v186 = vunpack.c.l.b16 %v82
    %v187 = vunpack.c.h.b16 %v82
    %v188 = vunpack.c.l.b16 %v83
    %v189 = vunpack.c.h.b16 %v83
    %v190 = vunpack.c.l.b16 %v84
    %v191 = vunpack.c.h.b16 %v84
    %v192 = vunpack.c.l.b16 %v85
    %v193 = vunpack.c.h.b16 %v85
    %v194 = vunpack.c.l.b16 %v86
    %v195 = vunpack.c.h.b16 %v86
    %v196 = vunpack.c.l.b16 %v87
    %v197 = vunpack.c.h.b16 %v87
    %v198 = vunpack.c.l.b16 %v88
    %v199 = vunpack.c.h.b16 %v88
    %v200 = vunpack.c.l.b16 %v89
    %v201 = vunpack.c.h.b16 %v89
    %v202 = vunpack.c.l.b16 %v90
    %v203 = vunpack.c.h.b16 %v90
    %v204 = vunpack.c.l.b16 %v91
    %v205 = vunpack.c.h.b16 %v91
    %v206 = vunpack.c.l.b16 %v92
    %v207 = vunpack.c.h.b16 %v92
    %v208 = vunpack.c.l.b16 %v93
    %v209 = vunpack.c.h.b16 %v93
    %v210 = vunpack.c.l.b16 %v94
    %v211 = vunpack.c.h.b16 %v94
    %v212 = vunpack.c.l.b16 %v95
    %v213 = vunpack.c.h.b16 %v95
    %v214 = vunpack.c.l.b16 %v96
    %v215 = vunpack.c.h.b16 %v96
    %v216 = vunpack.c.l.b16 %v97
    %v217 = vunpack.c.h.b16 %v97
    %v218 = vunpack.c.l.b16 %v98
    %v219 = vunpack.c.h.b16 %v98
    %v220 = vunpack.c.l.b16 %v99
    %v221 = vunpack.c.h.b16 %v99
    %v222 = vunpack.c.l.b16 %v100
    %v223 = vunpack.c.h.b16 %v100
    %v224 = vunpack.c.l.b16 %v101
    %v225 = vunpack.c.h.b16 %v101
    %v226 = vunpack.c.l.b16 %v102
    %v227 = vunpack.c.h.b16 %v102
    %v228 = vunpack.c.l.b16 %v103
    %v229 = vunpack.c.h.b16 %v103
    %v230 = vunpack.c.l.b16 %v104
    %v231 = vunpack.c.h.b16 %v104
    %v232 = vunpack.c.l.b16 %v105
    %v233 = vunpack.c.h.b16 %v105
    %v234 = vunpack.c.l.b16 %v106
    %v235 = vunpack.c.h.b16 %v106
    %v236 = vunpack.c.l.b16 %v107
    %v237 = vunpack.c.h.b16 %v107
    %v238 = vunpack.c.l.b16 %v108
    %v239 = vunpack.c.h.b16 %v108
    %v240 = vunpack.c.l.b16 %v109
    %v241 = vunpack.c.h.b16 %v109
    %v242 = vunpack.c.l.b16 %v110
    %v243 = vunpack.c.h.b16 %v110
    %v244 = vunpack.c.l.b16 %v111
    %v245 = vunpack.c.h.b16 %v111
    %v246 = vunpack.c.l.b16 %v112
    %v247 = vunpack.c.h.b16 %v112
    %v248 = vunpack.c.l.b16 %v113
    %v249 = vunpack.c.h.b16 %v113
    %v250 = vunpack.c.l.b16 %v114
    %v251 = vunpack.c.h.b16 %v114
    %v252 = vunpack.c.l.b16 %v115
    %v253 = vunpack.c.h.b16 %v115
    %v254 = vunpack.c.l.b16 %v116
    %v255 = vunpack.c.h.b16 %v116
    %v256 = vunpack.c.l.b16 %v117
    %v257 = vunpack.c.h.b16 %v117
    %v258 = vunpack.c.l.b16 %v118
    %v259 = vunpack.c.h.b16 %v118
    %v260 = vunpack.c.l.b16 %v119
    %v261 = vunpack.c.h.b16 %v119
    %v262 = vunpack.c.l.b16 %v120
    %v263 = vunpack.c.h.b16 %v120
    %v264 = vunpack.c.l.b16 %v121
    %v265 = vunpack.c.h.b16 %v121
    %v266 = vunpack.c.l.b16 %v122
    %v267 = vunpack.c.h.b16 %v122
    %v268 = vunpack.c.l.b16 %v123
    %v269 = vunpack.c.h.b16 %v123
    %v270 = vunpack.c.l.b16 %v124
    %v271 = vunpack.c.h.b16 %v124
    %v272 = vunpack.c.l.b16 %v125
    %v273 = vunpack.c.h.b16 %v125
    %v274 = vunpack.c.l.b16 %v126
    %v275 = vunpack.c.h.b16 %v126
    %v276 = vunpack.c.l.b16 %v127
    %v277 = vunpack.c.h.b16 %v127
    %v278 = vpack.c.b16 %v184, %v182
    %v279 = vpack.c.b16 %v185, %v183
    %v280 = vpack.c.b16 %v188, %v186
    %v281 = vpack.c.b16 %v189, %v187
    %v282 = vpack.c.b16 %v192, %v190
    %v283 = vpack.c.b16 %v193, %v191
    %v284 = vpack.c.b16 %v196, %v194
    %v285 = vpack.c.b16 %v197, %v195
    %v286 = vpack.c.b16 %v200, %v198
    %v287 = vpack.c.b16 %v201, %v199
    %v288 = vpack.c.b16 %v204, %v202
    %v289 = vpack.c.b16 %v205, %v203
    %v290 = vpack.c.b16 %v208, %v206
    %v291 = vpack.c.b16 %v209, %v207
    %v292 = vpack.c.b16 %v212, %v210
    %v293 = vpack.c.b16 %v213, %v211
    %v294 = vpack.c.b16 %v216, %v214
    %v295 = vpack.c.b16 %v217, %v215
    %v296 = vpack.c.b16 %v220, %v218
    %v297 = vpack.c.b16 %v221, %v219
    %v298 = vpack.c.b16 %v224, %v222
    %v299 = vpack.c.b16 %v225, %v223
    %v300 = vpack.c.b16 %v228, %v226
    %v301 = vpack.c.b16 %v229, %v227
    %v302 = vpack.c.b16 %v232, %v230
    %v303 = vpack.c.b16 %v233, %v231
    %v304 = vpack.c.b16 %v236, %v234
    %v305 = vpack.c.b16 %v237, %v235
    %v306 = vpack.c.b16 %v240, %v238
    %v307 = vpack.c.b16 %v241, %v239
    %v308 = vpack.c.b16 %v244, %v242
    %v309 = vpack.c.b16 %v245, %v243
    %v310 = vpack.c.b16 %v248, %v246
    %v311 = vpack.c.b16 %v249, %v247
    %v312 = vpack.c.b16 %v252, %v250
    %v313 = vpack.c.b16 %v253, %v251
    %v314 = vpack.c.b16 %v256, %v254
    %v315 = vpack.c.b16 %v257, %v255
    %v316 = vpack.c.b16 %v260, %v258
    %v317 = vpack.c.b16 %v261, %v259
    %v318 = vpack.c.b16 %v264, %v262
    %v319 = vpack.c.b16 %v265, %v263
    %v320 = vpack.c.b16 %v268, %v266
    %v321 = vpack.c.b16 %v269, %v267
    %v322 = vpack.c.b16 %v272, %v270
    %v323 = vpack.c.b16 %v273, %v271
    %v324 = vpack.c.b16 %v276, %v274
    %v325 = vpack.c.b16 %v277, %v275
    %374 = vmatpush.bf16.msra.mxu0 %v292
    %375 = vmatpush.bf16.msra.mxu0 %v290
    %376 = vmatpush.bf16.msra.mxu0 %v288
    %377 = vmatpush.bf16.msra.mxu0 %v286
    %378 = vmatpush.bf16.msra.mxu0 %v284
    %379 = vmatpush.bf16.msra.mxu0 %v282
    %380 = vmatpush.bf16.msra.mxu0 %v280
    %381 = vmatpush.bf16.msra.mxu0 %v278
    %382 = vmatmul.bf16.gmra.mxu0 %v77
    %v383 = vpop.f32.mrf.mxu0
    %v384 = vadd.f32 %v130, %v383
    %v385 = vpop.f32.mrf.mxu0
    %v386 = vadd.f32 %v130, %v385
    %387 = vdwg.mxu0
    %388 = vmatpush.bf16.msra.mxu0 %v308
    %389 = vmatpush.bf16.msra.mxu0 %v306
    %390 = vmatpush.bf16.msra.mxu0 %v304
    %391 = vmatpush.bf16.msra.mxu0 %v302
    %392 = vmatpush.bf16.msra.mxu0 %v300
    %393 = vmatpush.bf16.msra.mxu0 %v298
    %394 = vmatpush.bf16.msra.mxu0 %v296
    %395 = vmatpush.bf16.msra.mxu0 %v294
    %396 = vmatmul.bf16.gmra.mxu0 %v78
    %v397 = vpop.f32.mrf.mxu0
    %v398 = vadd.f32 %v384, %v397
    %v399 = vpop.f32.mrf.mxu0
    %v400 = vadd.f32 %v386, %v399
    %401 = vdwg.mxu0
    %402 = vmatpush.bf16.msra.mxu0 %v324
    %403 = vmatpush.bf16.msra.mxu0 %v322
    %404 = vmatpush.bf16.msra.mxu0 %v320
    %405 = vmatpush.bf16.msra.mxu0 %v318
    %406 = vmatpush.bf16.msra.mxu0 %v316
    %407 = vmatpush.bf16.msra.mxu0 %v314
    %408 = vmatpush.bf16.msra.mxu0 %v312
    %409 = vmatpush.bf16.msra.mxu0 %v310
    %410 = vmatmul.bf16.gmra.mxu0 %v79
    %v411 = vpop.f32.mrf.mxu0
    %v412 = vadd.f32 %v398, %v411
    %v413 = vpop.f32.mrf.mxu0
    %v414 = vadd.f32 %v400, %v413
    %415 = vdwg.mxu0
    %416 = vmatpush.bf16.msra.mxu0 %v293
    %417 = vmatpush.bf16.msra.mxu0 %v291
    %418 = vmatpush.bf16.msra.mxu0 %v289
    %419 = vmatpush.bf16.msra.mxu0 %v287
    %420 = vmatpush.bf16.msra.mxu0 %v285
    %421 = vmatpush.bf16.msra.mxu0 %v283
    %422 = vmatpush.bf16.msra.mxu0 %v281
    %423 = vmatpush.bf16.msra.mxu0 %v279
    %424 = vmatmul.bf16.gmra.mxu0 %v77
    %v425 = vpop.f32.mrf.mxu0
    %v426 = vadd.f32 %v131, %v425
    %v427 = vpop.f32.mrf.mxu0
    %v428 = vadd.f32 %v131, %v427
    %429 = vdwg.mxu0
    %430 = vmatpush.bf16.msra.mxu0 %v309
    %431 = vmatpush.bf16.msra.mxu0 %v307
    %432 = vmatpush.bf16.msra.mxu0 %v305
    %433 = vmatpush.bf16.msra.mxu0 %v303
    %434 = vmatpush.bf16.msra.mxu0 %v301
    %435 = vmatpush.bf16.msra.mxu0 %v299
    %436 = vmatpush.bf16.msra.mxu0 %v297
    %437 = vmatpush.bf16.msra.mxu0 %v295
    %438 = vmatmul.bf16.gmra.mxu0 %v78
    %v439 = vpop.f32.mrf.mxu0
    %v440 = vadd.f32 %v426, %v439
    %v441 = vpop.f32.mrf.mxu0
    %v442 = vadd.f32 %v428, %v441
    %443 = vdwg.mxu0
    %444 = vmatpush.bf16.msra.mxu0 %v325
    %445 = vmatpush.bf16.msra.mxu0 %v323
    %446 = vmatpush.bf16.msra.mxu0 %v321
    %447 = vmatpush.bf16.msra.mxu0 %v319
    %448 = vmatpush.bf16.msra.mxu0 %v317
    %449 = vmatpush.bf16.msra.mxu0 %v315
    %450 = vmatpush.bf16.msra.mxu0 %v313
    %451 = vmatpush.bf16.msra.mxu0 %v311
    %452 = vmatmul.bf16.gmra.mxu0 %v79
    %v453 = vpop.f32.mrf.mxu0
    %v454 = vadd.f32 %v440, %v453
    %v455 = vpop.f32.mrf.mxu0
    %v456 = vadd.f32 %v442, %v455
    %457 = vdwg.mxu0
    %v458 = vmax.f32 %v412, 0.0
    %v459 = vmax.f32 %v454, 0.0
    %v460 = vmax.f32 %v414, 0.0
    %v461 = vmax.f32 %v456, 0.0
    %v462 = vpack.c.bf16 %v460, %v458
    %v463 = vpack.c.bf16 %v461, %v459
    %v464 = vld [vmem:[#allocation5] sm:$0xf]
    %v465 = vld [vmem:[#allocation5 + $0x4] sm:$0xf]
    %v466 = vld [vmem:[#allocation5 + $0x8] sm:$0xf]
    %v467 = vld [vmem:[#allocation5 + $0xc] sm:$0xf]
    %v468 = vld [vmem:[#allocation5 + $0x10] sm:$0xf]
    %v469 = vld [vmem:[#allocation5 + $0x14] sm:$0xf]
    %v470 = vld [vmem:[#allocation5 + $0x18] sm:$0xf]
    %v471 = vld [vmem:[#allocation5 + $0x1c] sm:$0xf]
    %v472 = vld [vmem:[#allocation5 + $0x20] sm:$0xf]
    %v473 = vld [vmem:[#allocation5 + $0x24] sm:$0xf]
    %v474 = vld [vmem:[#allocation5 + $0x28] sm:$0xf]
    %v475 = vld [vmem:[#allocation5 + $0x2c] sm:$0xf]
    %v476 = vld [vmem:[#allocation5 + $0x30] sm:$0xf]
    %v477 = vld [vmem:[#allocation5 + $0x34] sm:$0xf]
    %v478 = vld [vmem:[#allocation5 + $0x38] sm:$0xf]
    %v479 = vld [vmem:[#allocation5 + $0x3c] sm:$0xf]
    %v480 = vld [vmem:[#allocation5 + $0x40] sm:$0xf]
    %v481 = vld [vmem:[#allocation5 + $0x44] sm:$0xf]
    %v482 = vld [vmem:[#allocation5 + $0x48] sm:$0xf]
    %v483 = vld [vmem:[#allocation5 + $0x4c] sm:$0xf]
    %v484 = vld [vmem:[#allocation5 + $0x50] sm:$0xf]
    %v485 = vld [vmem:[#allocation5 + $0x54] sm:$0xf]
    %v486 = vld [vmem:[#allocation5 + $0x58] sm:$0xf]
    %v487 = vld [vmem:[#allocation5 + $0x5c] sm:$0xf]
    %v488 = vld [vmem:[#allocation5 + $0x60] sm:$0xf]
    %v489 = vld [vmem:[#allocation5 + $0x64] sm:$0xf]
    %v490 = vld [vmem:[#allocation5 + $0x68] sm:$0xf]
    %v491 = vld [vmem:[#allocation5 + $0x6c] sm:$0xf]
    %v492 = vld [vmem:[#allocation5 + $0x70] sm:$0xf]
    %v493 = vld [vmem:[#allocation5 + $0x74] sm:$0xf]
    %v494 = vld [vmem:[#allocation5 + $0x78] sm:$0xf]
    %v495 = vld [vmem:[#allocation5 + $0x7c] sm:$0xf]
    %v496 = vld [vmem:[%s4] sm:$0x1]
    %v498 = vperm.slane %v496, 0
    %v532 = vunpack.c.l.b16 %v464
    %v533 = vunpack.c.l.b16 %v465
    %v534 = vunpack.c.l.b16 %v466
    %v535 = vunpack.c.l.b16 %v467
    %v536 = vunpack.c.l.b16 %v468
    %v537 = vunpack.c.l.b16 %v469
    %v538 = vunpack.c.l.b16 %v470
    %v539 = vunpack.c.l.b16 %v471
    %v540 = vunpack.c.l.b16 %v472
    %v541 = vunpack.c.l.b16 %v473
    %v542 = vunpack.c.l.b16 %v474
    %v543 = vunpack.c.l.b16 %v475
    %v544 = vunpack.c.l.b16 %v476
    %v545 = vunpack.c.l.b16 %v477
    %v546 = vunpack.c.l.b16 %v478
    %v547 = vunpack.c.l.b16 %v479
    %v548 = vunpack.c.l.b16 %v480
    %v549 = vunpack.c.l.b16 %v481
    %v550 = vunpack.c.l.b16 %v482
    %v551 = vunpack.c.l.b16 %v483
    %v552 = vunpack.c.l.b16 %v484
    %v553 = vunpack.c.l.b16 %v485
    %v554 = vunpack.c.l.b16 %v486
    %v555 = vunpack.c.l.b16 %v487
    %v556 = vunpack.c.l.b16 %v488
    %v557 = vunpack.c.l.b16 %v489
    %v558 = vunpack.c.l.b16 %v490
    %v559 = vunpack.c.l.b16 %v491
    %v560 = vunpack.c.l.b16 %v492
    %v561 = vunpack.c.l.b16 %v493
    %v562 = vunpack.c.l.b16 %v494
    %v563 = vunpack.c.l.b16 %v495
    %v564 = vpack.c.b16 %v533, %v532
    %v565 = vpack.c.b16 %v535, %v534
    %v566 = vpack.c.b16 %v537, %v536
    %v567 = vpack.c.b16 %v539, %v538
    %v568 = vpack.c.b16 %v541, %v540
    %v569 = vpack.c.b16 %v543, %v542
    %v570 = vpack.c.b16 %v545, %v544
    %v571 = vpack.c.b16 %v547, %v546
    %v572 = vpack.c.b16 %v549, %v548
    %v573 = vpack.c.b16 %v551, %v550
    %v574 = vpack.c.b16 %v553, %v552
    %v575 = vpack.c.b16 %v555, %v554
    %v576 = vpack.c.b16 %v557, %v556
    %v577 = vpack.c.b16 %v559, %v558
    %v578 = vpack.c.b16 %v561, %v560
    %v579 = vpack.c.b16 %v563, %v562
    %596 = vmatpush.bf16.msra.mxu0 %v571
    %597 = vmatpush.bf16.msra.mxu0 %v570
    %598 = vmatpush.bf16.msra.mxu0 %v569
    %599 = vmatpush.bf16.msra.mxu0 %v568
    %600 = vmatpush.bf16.msra.mxu0 %v567
    %601 = vmatpush.bf16.msra.mxu0 %v566
    %602 = vmatpush.bf16.msra.mxu0 %v565
    %603 = vmatpush.bf16.msra.mxu0 %v564
    %604 = vmatmul.bf16.gmra.mxu0 %v462
    %v605 = vpop.f32.mrf.mxu0
    %v606 = vadd.f32 %v498, %v605
    %v607 = vpop.f32.mrf.mxu0
    %v608 = vadd.f32 %v498, %v607
    %609 = vdwg.mxu0
    %610 = vmatpush.bf16.msra.mxu0 %v579
    %611 = vmatpush.bf16.msra.mxu0 %v578
    %612 = vmatpush.bf16.msra.mxu0 %v577
    %613 = vmatpush.bf16.msra.mxu0 %v576
    %614 = vmatpush.bf16.msra.mxu0 %v575
    %615 = vmatpush.bf16.msra.mxu0 %v574
    %616 = vmatpush.bf16.msra.mxu0 %v573
    %617 = vmatpush.bf16.msra.mxu0 %v572
    %618 = vmatmul.bf16.gmra.mxu0 %v463
    %v619 = vpop.f32.mrf.mxu0
    %v620 = vadd.f32 %v606, %v619
    %v621 = vpop.f32.mrf.mxu0
    %v622 = vadd.f32 %v608, %v621
    %623 = vdwg.mxu0
    %v624 = vmax.f32 %v620, 0.0
    %v625 = vmax.f32 %v622, 0.0
    %v626 = vpack.c.bf16 %v625, %v624
    %v627 = vld [vmem:[%s5] sm:$0xf]
    %v628 = vld [vmem:[%s5 + $0x4] sm:$0xf]
    %v629 = vld [vmem:[%s5 + $0x8] sm:$0xf]
    %v630 = vld [vmem:[%s5 + $0xc] sm:$0xf]
    %v631 = vld [vmem:[%s5 + $0x10] sm:$0xf]
    %v632 = vld [vmem:[%s5 + $0x14] sm:$0xf]
    %v633 = vld [vmem:[%s5 + $0x18] sm:$0xf]
    %v634 = vld [vmem:[%s5 + $0x1c] sm:$0xf]
    %v635 = vld [vmem:[%s5 + $0x20] sm:$0xf]
    %v636 = vld [vmem:[%s5 + $0x24] sm:$0xf]
    %v637 = vld [vmem:[%s5 + $0x28] sm:$0xf]
    %v638 = vld [vmem:[%s5 + $0x2c] sm:$0xf]
    %v639 = vld [vmem:[%s5 + $0x30] sm:$0xf]
    %v640 = vld [vmem:[%s5 + $0x34] sm:$0xf]
    %v641 = vld [vmem:[%s5 + $0x38] sm:$0xf]
    %v642 = vld [vmem:[%s5 + $0x3c] sm:$0xf]
    %v643 = vld [vmem:[%s6] sm:$0x1]
    %v645 = vperm.slane %v643, 0
    %v663 = vunpack.c.l.b16 %v627
    %v664 = vunpack.c.l.b16 %v628
    %v665 = vunpack.c.l.b16 %v629
    %v666 = vunpack.c.l.b16 %v630
    %v667 = vunpack.c.l.b16 %v631
    %v668 = vunpack.c.l.b16 %v632
    %v669 = vunpack.c.l.b16 %v633
    %v670 = vunpack.c.l.b16 %v634
    %v671 = vunpack.c.l.b16 %v635
    %v672 = vunpack.c.l.b16 %v636
    %v673 = vunpack.c.l.b16 %v637
    %v674 = vunpack.c.l.b16 %v638
    %v675 = vunpack.c.l.b16 %v639
    %v676 = vunpack.c.l.b16 %v640
    %v677 = vunpack.c.l.b16 %v641
    %v678 = vunpack.c.l.b16 %v642
    %v679 = vpack.c.b16 %v664, %v663
    %v680 = vpack.c.b16 %v666, %v665
    %v681 = vpack.c.b16 %v668, %v667
    %v682 = vpack.c.b16 %v670, %v669
    %v683 = vpack.c.b16 %v672, %v671
    %v684 = vpack.c.b16 %v674, %v673
    %v685 = vpack.c.b16 %v676, %v675
    %v686 = vpack.c.b16 %v678, %v677
    %695 = vmatpush.bf16.msra.mxu0 %v686
    %696 = vmatpush.bf16.msra.mxu0 %v685
    %697 = vmatpush.bf16.msra.mxu0 %v684
    %698 = vmatpush.bf16.msra.mxu0 %v683
    %699 = vmatpush.bf16.msra.mxu0 %v682
    %700 = vmatpush.bf16.msra.mxu0 %v681
    %701 = vmatpush.bf16.msra.mxu0 %v680
    %702 = vmatpush.bf16.msra.mxu0 %v679
    %703 = vmatmul.bf16.gmra.mxu0 %v626
    %v704 = vpop.f32.mrf.mxu0
    %v705 = vadd.f32 %v645, %v704
    %v706 = vpop.f32.mrf.mxu0
    %v707 = vadd.f32 %v645, %v706
    %708 = vdwg.mxu0
    %v709 = vmax.f32 %v705, 0.0
    %v710 = vmax.f32 %v707, 0.0
    %v711 = vpack.c.bf16 %v710, %v709
    %v712 = vld [vmem:[%s7] sm:$0xf]
    %v713 = vld [vmem:[%s7 + $0x4] sm:$0xf]
    %v714 = vld [vmem:[%s7 + $0x8] sm:$0xf]
    %v715 = vld [vmem:[%s7 + $0xc] sm:$0xf]
    %v716 = vld [vmem:[%s7 + $0x10] sm:$0xf]
    %v717 = vld [vmem:[%s7 + $0x14] sm:$0xf]
    %v718 = vld [vmem:[%s7 + $0x18] sm:$0xf]
    %v719 = vld [vmem:[%s7 + $0x1c] sm:$0xf]
    %v720 = vld [vmem:[%s8] sm:$0x1]
    %v722 = vperm.slane %v720, 0
    %v732 = vunpack.c.l.b16 %v712
    %v733 = vunpack.c.l.b16 %v713
    %v734 = vunpack.c.l.b16 %v714
    %v735 = vunpack.c.l.b16 %v715
    %v736 = vunpack.c.l.b16 %v716
    %v737 = vunpack.c.l.b16 %v717
    %v738 = vunpack.c.l.b16 %v718
    %v739 = vunpack.c.l.b16 %v719
    %v740 = vpack.c.b16 %v733, %v732
    %v741 = vpack.c.b16 %v735, %v734
    %v742 = vpack.c.b16 %v737, %v736
    %v743 = vpack.c.b16 %v739, %v738
    %vm748 = vcmask 523264
    %v750 = vsel %vm748, %v711, 0
    %752 = vmatpush.bf16.msra.mxu0 0
    %753 = vmatpush.bf16.msra.mxu0 0
    %754 = vmatpush.bf16.msra.mxu0 0
    %755 = vmatpush.bf16.msra.mxu0 0
    %756 = vmatpush.bf16.msra.mxu0 %v743
    %757 = vmatpush.bf16.msra.mxu0 %v742
    %758 = vmatpush.bf16.msra.mxu0 %v741
    %759 = vmatpush.bf16.msra.mxu0 %v740
    %760 = vmatmul.bf16.gmra.mxu0 %v750
    %v761 = vpop.f32.mrf.mxu0
    %v762 = vadd.f32 %v722, %v761
    %v763 = vpop.f32.mrf.mxu0
    %v764 = vadd.f32 %v722, %v763
    %765 = vdwg.mxu0
    %v766 = vld [vmem:[#allocation7] sm:$0x1]
    %v767 = vmax.f32 %v762, %v764
    %v768 = vrot.slane %v767, 4
    %v769 = vmax.f32 %v767, %v768
    %v770 = vrot.slane %v769, 2
    %v771 = vmax.f32 %v769, %v770
    %v772 = vrot.slane %v771, 1
    %v773 = vmax.f32 %v771, %v772
    %v774 = vmax.f32 %v766, %v773
    %775 = vst [vmem:[#allocation7] sm:$0x1] %v774
    // Predicated region
    $region50: #{tpu_custom_call.1} parent=1 // pred_check
      %p776 = pneg %p66
    $region51: #{tpu_custom_call.1} parent=1 // pred_check_branch
      %778 = sbr.rel (%p776) target = $region53
    $region52: #{tpu_custom_call.1} parent=1 // pred_region
      %v779 = vld [vmem:[#allocation7] sm:$0x1]
      %v780 = vxor.u32 %v779, 2147483648
      %v781 = vmul.f32 %v780, 1.442695
      %v782 = vpow.pop %v781
      %v783 = vadd.f32 %v782, 1.0
      %v784 = vrcp.pop %v783
      %v785 = vmul.f32 %v783, %v784
      %v786 = vsub.f32 1.0, %v785
      %v787 = vmul.f32 %v784, %v786
      %v788 = vadd.f32 %v784, %v787
      %vm789 = vweird.f32 %v783
      %vm790 = vweird.f32 %v784
      %vm791 = vmor %vm789, %vm790
      %v792 = vsel %vm791, %v784, %v788
      %v793 = vand.u32 2147483647, %v783
      %vm794 = vcmp.eq.f32.partialorder %v793, 8.507059e+37
      %v795 = vand.u32 %v783, 2147483648
      %v796 = vor.u32 1.1754944e-38, %v795
      %v797 = vsel %vm794, %v796, %v792
      %v798 = vmul.f32 1.0, %v797
      %799 = vst [vmem:[#allocation7] sm:$0x1] %v798
    $region53: #{tpu_custom_call.1} parent=1 // pred_fallthru
      _
    // Predicated region
    $region54: #{tpu_custom_call.1} parent=1 // pred_check
      _
    $region55: #{tpu_custom_call.1} parent=1 // pred_check_branch
      %801 = sbr.rel (0) target = $region57
    $region56: #{tpu_custom_call.1} parent=1 // pred_region
      %803 = vsyncadd [#allocation4], 0
      %s805 = sshll.u32 [#allocation7], 4
      %s806 = int_to_ptr.vmem [resolvable:$true] %s805
      %s807 = sshll.u32 %s9, 4
      %s808 = int_to_ptr.hbm [resolvable:$true] %s807
      %810 = dma.vmem_to_hbm [thread:$0]  %s806, 16, %s808, [#allocation4]
    $region57: #{tpu_custom_call.1} parent=1 // pred_fallthru
      _
    // Predicated region
    $region58: #{tpu_custom_call.1} parent=1 // pred_check
      _
    $region59: #{tpu_custom_call.1} parent=1 // pred_check_branch
      %812 = sbr.rel (0) target = $region61
    $region60: #{tpu_custom_call.1} parent=1 // pred_region
      %814 = dma.done [#allocation4], 16
    $region61: #{tpu_custom_call.1} parent=1 // pred_fallthru
      _
    %815 = vsyncpa [#allocation3], 1
    %816 = vsyncpa [#allocation6], 1
    %817 = vsyncpa [#allocation4], 1

</llo_original>
